<compile_context>
chip_gen: v7x
topology: tpu7x:2x2x1
jax: 0.10.0
libtpu: 0.0.40
codegen_flags: <defaults>
</compile_context>

<pallas_src>
import jax
import jax.numpy as jnp
import numpy as np
from jax.experimental import pallas as pl
from jax.experimental.pallas import tpu as pltpu


def _round_up(x, m):
    return ((x + m - 1) // m) * m


def _pick_tile(dim, cap):
    # dim is a multiple of 128; largest multiple of 128 <= cap that divides dim.
    t = min(dim, cap)
    while dim % t:
        t -= 128
    return t


def lfar_kernel(a_ref, h_ref, w_ref, b_ref, o_ref, acc_ref):
    """Grid = (i: out_feats tiles, j: D tiles, k: node-reduction tiles)."""
    k = pl.program_id(2)

    @pl.when(k == 0)
    def _():
        acc_ref[...] = jnp.zeros_like(acc_ref)

    # Neighborhood sum-aggregation for this k-tile of destination nodes:
    #   agg[n, d] = sum_m A[n, m] * H[m, d]      (bf16 MXU, f32 accumulate)
    agg = jnp.dot(a_ref[...], h_ref[...], preferred_element_type=jnp.float32)

    # Partial linear layer over this k-tile of nodes:
    #   acc[o, d] += sum_{n in k-tile} W[o, n] * agg[n, d]
    acc_ref[...] += jnp.dot(w_ref[...], agg.astype(jnp.bfloat16),
                            preferred_element_type=jnp.float32)

    @pl.when(k == pl.num_programs(2) - 1)
    def _():
        # f32 epilogue: bias broadcast over the lane (D) axis + ReLU.
        z = acc_ref[...] + b_ref[...]
        o_ref[...] = jnp.maximum(z, 0.0).astype(o_ref.dtype)


def lfar_forward(adj, feature, weight, bias, *, tm_cap=256, tn_cap=512, tk_cap=512):
    """adj: (N, N), feature: (D, N), weight: (out_feats, N), bias: (out_feats,)
    -> (out_feats, D) float32, matching the PyTorch module's returned tensor."""
    N = adj.shape[0]
    D = feature.shape[0]
    out_feats = weight.shape[0]

    Np = _round_up(N, 128)
    Dp = _round_up(D, 128)
    Op = _round_up(out_feats, 128)

    # Glue: zero-pad to 128-aligned, lane-dense shapes; bf16 MXU operands.
    a_p = jnp.zeros((Np, Np), jnp.bfloat16).at[:N, :N].set(adj.astype(jnp.bfloat16))
    h_p = jnp.zeros((Np, Dp), jnp.bfloat16).at[:N, :D].set(feature.T.astype(jnp.bfloat16))
    w_p = jnp.zeros((Op, Np), jnp.bfloat16).at[:out_feats, :N].set(weight.astype(jnp.bfloat16))
    b_p = jnp.zeros((Op, 1), jnp.float32).at[:out_feats, 0].set(bias.astype(jnp.float32))

    tm = _pick_tile(Op, tm_cap)   # out_feats tile
    tn = _pick_tile(Dp, tn_cap)   # feature-width (lane) tile
    tk = _pick_tile(Np, tk_cap)   # node-reduction tile
    grid = (Op // tm, Dp // tn, Np // tk)

    # TODO(synk): for very large N the A row-block (tk, Np) spans the full padded
    # node axis; tile the inner m-contraction as well before scaling N past VMEM.
    out_p = pl.pallas_call(
        lfar_kernel,
        out_shape=jax.ShapeDtypeStruct((Op, Dp), jnp.float32),
        grid_spec=pltpu.PrefetchScalarGridSpec(
            num_scalar_prefetch=0,
            grid=grid,
            in_specs=[
                pl.BlockSpec((tk, Np), lambda i, j, k: (k, 0)),   # A row-block (dst nodes)
                pl.BlockSpec((Np, tn), lambda i, j, k: (0, j)),   # H column-block
                pl.BlockSpec((tm, tk), lambda i, j, k: (i, k)),   # W tile
                pl.BlockSpec((tm, 1), lambda i, j, k: (i, 0)),    # bias column
            ],
            out_specs=pl.BlockSpec((tm, tn), lambda i, j, k: (i, j)),
            scratch_shapes=[pltpu.VMEM((tm, tn), jnp.float32)],
        ),
        compiler_params=pltpu.CompilerParams(
            dimension_semantics=("parallel", "parallel", "arbitrary"),
            vmem_limit_bytes=64 * 1024 * 1024,
        ),
    )(a_p, h_p, w_p, b_p)

    return out_p[:out_feats, :D]


if __name__ == "__main__":
    # N (num_nodes) must equal in_feats for the original module's transposes
    # to type-check; keep shapes small and deterministic.
    in_feats = 16          # == num_nodes N
    out_feats = 32
    D = 8                  # per-node feature width (feature is (D, N))

    key = jax.random.PRNGKey(0)
    k_adj, k_feat, k_w, k_b = jax.random.split(key, 4)

    # Dense adjacency A[dst, src] in {0, 1}.
    adj = (jax.random.uniform(k_adj, (in_feats, in_feats)) < 0.3).astype(jnp.float32)
    feature = jax.random.normal(k_feat, (D, in_feats), dtype=jnp.float32)

    bound = 1.0 / np.sqrt(in_feats)
    weight = jax.random.uniform(k_w, (out_feats, in_feats),
                                minval=-bound, maxval=bound, dtype=jnp.float32)
    bias = jax.random.uniform(k_b, (out_feats,),
                              minval=-bound, maxval=bound, dtype=jnp.float32)

    out = lfar_forward(adj, feature, weight, bias)
    out = jax.block_until_ready(out)
    assert out.shape == (out_feats, D)

    # Pure-JAX reference of the exact PyTorch forward, using the same bf16
    # quantization of A / H / W / agg that the kernel feeds to the MXU (f32
    # accumulation, f32 bias + ReLU). Relative to a pure-f32 reference the
    # remaining difference is just bf16 input roundoff (~0.4%).
    a_q = adj.astype(jnp.bfloat16)
    h_q = feature.T.astype(jnp.bfloat16)
    w_q = weight.astype(jnp.bfloat16)
    agg = jnp.dot(a_q, h_q, preferred_element_type=jnp.float32)                 # (N, D)
    z = jnp.dot(w_q, agg.astype(jnp.bfloat16),
                preferred_element_type=jnp.float32) + bias[:, None]             # (out, D)
    ref = jnp.maximum(z, 0.0)

    np.testing.assert_allclose(np.asarray(out), np.asarray(ref), rtol=1e-2, atol=1e-2)

    print("KERNEL_OK")
</pallas_src>

<mosaic_0001>
module attributes {stable_mosaic.version = 11 : i64} {
  func.func @lfar_kernel(%arg0: i32, %arg1: i32, %arg2: i32, %arg3: memref<128x128xbf16, #tpu.memory_space<vmem>>, %arg4: memref<128x128xbf16, #tpu.memory_space<vmem>>, %arg5: memref<128x128xbf16, #tpu.memory_space<vmem>>, %arg6: memref<128x1xf32, #tpu.memory_space<vmem>>, %arg7: memref<128x128xf32, #tpu.memory_space<vmem>>, %arg8: memref<128x128xf32, #tpu.memory_space<vmem>>) attributes {dimension_semantics = [#tpu.dimension_semantics<parallel>, #tpu.dimension_semantics<parallel>, #tpu.dimension_semantics<arbitrary>], iteration_bounds = array<i64: 1, 1, 1>, scalar_prefetch = 0 : i64, scratch_operands = 1 : i64, tpu.core_type = #tpu.core_type<tc>, window_params = [{transform_indices = @transform_0, window_bounds = array<i64: 128, 128>}, {transform_indices = @transform_1, window_bounds = array<i64: 128, 128>}, {transform_indices = @transform_2, window_bounds = array<i64: 128, 128>}, {transform_indices = @transform_3, window_bounds = array<i64: 128, 1>}, {transform_indices = @transform_4, window_bounds = array<i64: 128, 128>}]} {
    %c0_i32 = arith.constant 0 : i32
    %0 = arith.cmpi eq, %arg2, %c0_i32 : i32
    %1 = arith.extui %0 : i1 to i32
    %c0_i32_0 = arith.constant 0 : i32
    %2 = arith.cmpi ne, %1, %c0_i32_0 : i32
    scf.if %2 {
      %cst_13 = arith.constant 0.000000e+00 : f32
      %15 = vector.broadcast %cst_13 : f32 to vector<128x128xf32>
      %c0_14 = arith.constant 0 : index
      %c0_15 = arith.constant 0 : index
      %16 = vector.load %arg8[%c0_14, %c0_15] : memref<128x128xf32, #tpu.memory_space<vmem>>, vector<128x128xf32>
      tpu.vector_store %arg8[%c0_14, %c0_15], %15 {strides = array<i32>} : memref<128x128xf32, #tpu.memory_space<vmem>>, vector<128x128xf32>,
    } else {
    }
    %c0 = arith.constant 0 : index
    %c0_1 = arith.constant 0 : index
    %3 = vector.load %arg3[%c0, %c0_1] : memref<128x128xbf16, #tpu.memory_space<vmem>>, vector<128x128xbf16>
    %c0_2 = arith.constant 0 : index
    %c0_3 = arith.constant 0 : index
    %4 = vector.load %arg4[%c0_2, %c0_3] : memref<128x128xbf16, #tpu.memory_space<vmem>>, vector<128x128xbf16>
    %cst = arith.constant dense<0.000000e+00> : vector<128x128xf32>
    %5 = tpu.matmul %3, %4, %cst {dimension_numbers = #tpu.dot_dimension_numbers<[1], [0], [0], [1], [0, 0, 1, 1], [], []>} : vector<128x128xbf16>, vector<128x128xbf16>, vector<128x128xf32> -> vector<128x128xf32>
    %c0_4 = arith.constant 0 : index
    %c0_5 = arith.constant 0 : index
    %6 = vector.load %arg8[%c0_4, %c0_5] : memref<128x128xf32, #tpu.memory_space<vmem>>, vector<128x128xf32>
    %c0_6 = arith.constant 0 : index
    %c0_7 = arith.constant 0 : index
    %7 = vector.load %arg5[%c0_6, %c0_7] : memref<128x128xbf16, #tpu.memory_space<vmem>>, vector<128x128xbf16>
    %8 = arith.truncf %5 : vector<128x128xf32> to vector<128x128xbf16>
    %cst_8 = arith.constant dense<0.000000e+00> : vector<128x128xf32>
    %9 = tpu.matmul %7, %8, %cst_8 {dimension_numbers = #tpu.dot_dimension_numbers<[1], [0], [0], [1], [0, 0, 1, 1], [], []>} : vector<128x128xbf16>, vector<128x128xbf16>, vector<128x128xf32> -> vector<128x128xf32>
    %10 = arith.addf %6, %9 : vector<128x128xf32>
    %c0_9 = arith.constant 0 : index
    %c0_10 = arith.constant 0 : index
    %11 = vector.load %arg8[%c0_9, %c0_10] : memref<128x128xf32, #tpu.memory_space<vmem>>, vector<128x128xf32>
    tpu.vector_store %arg8[%c0_9, %c0_10], %10 {strides = array<i32>} : memref<128x128xf32, #tpu.memory_space<vmem>>, vector<128x128xf32>,
    %c0_i32_11 = arith.constant 0 : i32
    %12 = arith.cmpi eq, %arg2, %c0_i32_11 : i32
    %13 = arith.extui %12 : i1 to i32
    %c0_i32_12 = arith.constant 0 : i32
    %14 = arith.cmpi ne, %13, %c0_i32_12 : i32
    scf.if %14 {
      %c0_13 = arith.constant 0 : index
      %c0_14 = arith.constant 0 : index
      %15 = vector.load %arg8[%c0_13, %c0_14] : memref<128x128xf32, #tpu.memory_space<vmem>>, vector<128x128xf32>
      %c0_15 = arith.constant 0 : index
      %c0_16 = arith.constant 0 : index
      %16 = vector.load %arg6[%c0_15, %c0_16] : memref<128x1xf32, #tpu.memory_space<vmem>>, vector<128x1xf32>
      %17 = vector.broadcast %16 : vector<128x1xf32> to vector<128x128xf32>
      %18 = arith.addf %15, %17 : vector<128x128xf32>
      %cst_17 = arith.constant 0.000000e+00 : f32
      %19 = vector.broadcast %cst_17 : f32 to vector<128x128xf32>
      %20 = arith.maximumf %18, %19 : vector<128x128xf32>
      %c0_18 = arith.constant 0 : index
      %c0_19 = arith.constant 0 : index
      %21 = vector.load %arg7[%c0_18, %c0_19] : memref<128x128xf32, #tpu.memory_space<vmem>>, vector<128x128xf32>
      tpu.vector_store %arg7[%c0_18, %c0_19], %20 {strides = array<i32>} : memref<128x128xf32, #tpu.memory_space<vmem>>, vector<128x128xf32>,
    } else {
    }
    return
  }
  func.func @transform_0(%arg0: i32, %arg1: i32, %arg2: i32) -> (i32, i32) {
    %c0_i32 = arith.constant 0 : i32
    %c0_i32_0 = arith.constant 0 : i32
    return %arg2, %c0_i32 : i32, i32
  }
  func.func @transform_1(%arg0: i32, %arg1: i32, %arg2: i32) -> (i32, i32) {
    %c0_i32 = arith.constant 0 : i32
    %c0_i32_0 = arith.constant 0 : i32
    return %c0_i32, %arg1 : i32, i32
  }
  func.func @transform_2(%arg0: i32, %arg1: i32, %arg2: i32) -> (i32, i32) {
    %c0_i32 = arith.constant 0 : i32
    return %arg0, %arg2 : i32, i32
  }
  func.func @transform_3(%arg0: i32, %arg1: i32, %arg2: i32) -> (i32, i32) {
    %c0_i32 = arith.constant 0 : i32
    %c0_i32_0 = arith.constant 0 : i32
    return %arg0, %c0_i32 : i32, i32
  }
  func.func @transform_4(%arg0: i32, %arg1: i32, %arg2: i32) -> (i32, i32) {
    %c0_i32 = arith.constant 0 : i32
    return %arg0, %arg1 : i32, i32
  }
}

</mosaic_0001>

<llo_original>
// kernel: tpu_custom_call.1
$region0: #{tpu_custom_call.1}
  #allocation0 [shape = 'u32[]', space=smem, size = 0x4, offset = 0x4, fixed_abs, tag = 'smem constant byte address 0x4 - core index']
  #allocation1 [shape = 'u32[144,128]{1,0:T(1,128)}', space=vmem, size = 0x12000, scoped, tag = 'internal scratch']
  #allocation2 [shape = 'f32[128,128]{1,0:T(8,128)}', space=vmem, size = 0x10000, scoped, tag = 'scratch operand']
  %s0 = inlined_call_operand.hbm [shape: bf16[128,128], index: 0, kind: input, shape index: {}]
  %s1 = inlined_call_operand.hbm [shape: bf16[128,128], index: 1, kind: input, shape index: {}]
  %s2 = inlined_call_operand.hbm [shape: bf16[128,128], index: 2, kind: input, shape index: {}]
  %s3 = inlined_call_operand.hbm [shape: f32[128,1], index: 3, kind: input, shape index: {}]
  %s4 = inlined_call_operand.hbm [shape: f32[128,128], index: 4, kind: output, shape index: {}]
  %s5 = sld [smem:[#allocation0]]
  $region50: #{tpu_custom_call.1} parent=0
    _
  %s7 = ssub.s32 1, %s5
  %s8 = scalar_select 0, %s7, %s5
  $region1: #{tpu_custom_call.1} parent=0
    #allocation3 [shape = 'u8[32768]{0}', space=vmem, size = 0x8000, scoped, tag = 'input window, operand 0, single buffered']
    #allocation4 [shape = 's32[1]{0}', space=sflag, size = 0x4, scoped, tag = 'scoped memory for tpu_custom_call.1']
    #allocation5 [shape = 's32[1]{0}', space=sflag, size = 0x4, scoped, tag = 'scoped memory for tpu_custom_call.1']
    #allocation6 [shape = 'u8[32768]{0}', space=vmem, size = 0x8000, scoped, tag = 'input window, operand 1, single buffered']
    #allocation7 [shape = 's32[1]{0}', space=sflag, size = 0x4, scoped, tag = 'scoped memory for tpu_custom_call.1']
    #allocation8 [shape = 'u8[32768]{0}', space=vmem, size = 0x8000, scoped, tag = 'input window, operand 2, single buffered']
    #allocation9 [shape = 'u8[65536]{0}', space=vmem, size = 0x10000, scoped, tag = 'input window, operand 3, single buffered']
    #allocation10 [shape = 's32[1]{0}', space=sflag, size = 0x4, scoped, tag = 'scoped memory for tpu_custom_call.1']
    #allocation11 [shape = 'u8[65536]{0}', space=vmem, size = 0x10000, scoped, tag = 'output window, operand 0, single buffered']
    %9 = vsyncpa [#allocation4], 0
    %10 = vsyncpa [#allocation7], 0
    %11 = vsyncpa [#allocation10], 0
    %12 = vsyncpa [#allocation5], 0
    // Predicated region
    $region2: #{tpu_custom_call.1} parent=1 // pred_check
      _
    $region3: #{tpu_custom_call.1} parent=1 // pred_check_branch
      %14 = sbr.rel (0) target = $region5
    $region4: #{tpu_custom_call.1} parent=1 // pred_region
      %s16 = ssub.s32 1024, 1024
      %17 = vsyncadd [#allocation4], %s16
      %s18 = sshll.u32 [#allocation3], 4
      %s19 = int_to_ptr.vmem [resolvable:$true] %s18
      %24 = dma.hbm_to_vmem [thread:$0]  %s0, 1024, %s19, [#allocation4], 64, 64, 4
    $region5: #{tpu_custom_call.1} parent=1 // pred_fallthru
      _
    // Predicated region
    $region6: #{tpu_custom_call.1} parent=1 // pred_check
      _
    $region7: #{tpu_custom_call.1} parent=1 // pred_check_branch
      %26 = sbr.rel (0) target = $region9
    $region8: #{tpu_custom_call.1} parent=1 // pred_region
      %s28 = ssub.s32 1024, 1024
      %29 = vsyncadd [#allocation7], %s28
      %s30 = sshll.u32 [#allocation6], 4
      %s31 = int_to_ptr.vmem [resolvable:$true] %s30
      %36 = dma.hbm_to_vmem [thread:$0]  %s1, 1024, %s31, [#allocation7], 64, 64, 4
    $region9: #{tpu_custom_call.1} parent=1 // pred_fallthru
      _
    // Predicated region
    $region10: #{tpu_custom_call.1} parent=1 // pred_check
      _
    $region11: #{tpu_custom_call.1} parent=1 // pred_check_branch
      %38 = sbr.rel (0) target = $region13
    $region12: #{tpu_custom_call.1} parent=1 // pred_region
      %s40 = ssub.s32 1024, 1024
      %41 = vsyncadd [#allocation7], %s40
      %s42 = sshll.u32 [#allocation8], 4
      %s43 = int_to_ptr.vmem [resolvable:$true] %s42
      %48 = dma.hbm_to_vmem [thread:$0]  %s2, 1024, %s43, [#allocation7], 64, 64, 4
    $region13: #{tpu_custom_call.1} parent=1 // pred_fallthru
      _
    // Predicated region
    $region14: #{tpu_custom_call.1} parent=1 // pred_check
      _
    $region15: #{tpu_custom_call.1} parent=1 // pred_check_branch
      %50 = sbr.rel (0) target = $region17
    $region16: #{tpu_custom_call.1} parent=1 // pred_region
      %s52 = ssub.s32 2048, 2048
      %53 = vsyncadd [#allocation10], %s52
      %s54 = sshll.u32 [#allocation9], 4
      %s55 = int_to_ptr.vmem [resolvable:$true] %s54
      %60 = dma.hbm_to_vmem [thread:$0]  %s3, 2048, %s55, [#allocation10], 128, 128, 8
    $region17: #{tpu_custom_call.1} parent=1 // pred_fallthru
      _
    // Predicated region
    $region18: #{tpu_custom_call.1} parent=1 // pred_check
      _
    $region19: #{tpu_custom_call.1} parent=1 // pred_check_branch
      %62 = sbr.rel (0) target = $region21
    $region20: #{tpu_custom_call.1} parent=1 // pred_region
      %63 = dma.done [#allocation4], 1024
    $region21: #{tpu_custom_call.1} parent=1 // pred_fallthru
      _
    // Predicated region
    $region22: #{tpu_custom_call.1} parent=1 // pred_check
      _
    $region23: #{tpu_custom_call.1} parent=1 // pred_check_branch
      %65 = sbr.rel (0) target = $region25
    $region24: #{tpu_custom_call.1} parent=1 // pred_region
      %66 = dma.done [#allocation7], 1024
    $region25: #{tpu_custom_call.1} parent=1 // pred_fallthru
      _
    // Predicated region
    $region26: #{tpu_custom_call.1} parent=1 // pred_check
      _
    $region27: #{tpu_custom_call.1} parent=1 // pred_check_branch
      %68 = sbr.rel (0) target = $region29
    $region28: #{tpu_custom_call.1} parent=1 // pred_region
      %69 = dma.done [#allocation7], 1024
    $region29: #{tpu_custom_call.1} parent=1 // pred_fallthru
      _
    // Predicated region
    $region30: #{tpu_custom_call.1} parent=1 // pred_check
      _
    $region31: #{tpu_custom_call.1} parent=1 // pred_check_branch
      %71 = sbr.rel (0) target = $region33
    $region32: #{tpu_custom_call.1} parent=1 // pred_region
      %72 = dma.done [#allocation10], 2048
    $region33: #{tpu_custom_call.1} parent=1 // pred_fallthru
      _
    %p74 = scmp.eq.s32.totalorder 0, 0
    // Predicated region
    $region34: #{tpu_custom_call.1} parent=1 // pred_check
      %p75 = pneg %p74
    $region35: #{tpu_custom_call.1} parent=1 // pred_check_branch
      %77 = sbr.rel (%p75) target = $region37
    $region36: #{tpu_custom_call.1} parent=1 // pred_region
      %78 = vst [vmem:[#allocation2] sm:$0xff] 0.0
      %79 = vst [vmem:[#allocation2 + $0x8] sm:$0xff] 0.0
      %80 = vst [vmem:[#allocation2 + $0x10] sm:$0xff] 0.0
      %81 = vst [vmem:[#allocation2 + $0x18] sm:$0xff] 0.0
      %82 = vst [vmem:[#allocation2 + $0x20] sm:$0xff] 0.0
      %83 = vst [vmem:[#allocation2 + $0x28] sm:$0xff] 0.0
      %84 = vst [vmem:[#allocation2 + $0x30] sm:$0xff] 0.0
      %85 = vst [vmem:[#allocation2 + $0x38] sm:$0xff] 0.0
      %86 = vst [vmem:[#allocation2 + $0x40] sm:$0xff] 0.0
      %87 = vst [vmem:[#allocation2 + $0x48] sm:$0xff] 0.0
      %88 = vst [vmem:[#allocation2 + $0x50] sm:$0xff] 0.0
      %89 = vst [vmem:[#allocation2 + $0x58] sm:$0xff] 0.0
      %90 = vst [vmem:[#allocation2 + $0x60] sm:$0xff] 0.0
      %91 = vst [vmem:[#allocation2 + $0x68] sm:$0xff] 0.0
      %92 = vst [vmem:[#allocation2 + $0x70] sm:$0xff] 0.0
      %93 = vst [vmem:[#allocation2 + $0x78] sm:$0xff] 0.0
    $region37: #{tpu_custom_call.1} parent=1 // pred_fallthru
      _
    %v94 = vld [vmem:[#allocation3] sm:$0xf]
    %v95 = vld [vmem:[#allocation3 + $0x4] sm:$0xf]
    %v96 = vld [vmem:[#allocation3 + $0x8] sm:$0xf]
    %v97 = vld [vmem:[#allocation3 + $0xc] sm:$0xf]
    %v98 = vld [vmem:[#allocation3 + $0x10] sm:$0xf]
    %v99 = vld [vmem:[#allocation3 + $0x14] sm:$0xf]
    %v100 = vld [vmem:[#allocation3 + $0x18] sm:$0xf]
    %v101 = vld [vmem:[#allocation3 + $0x1c] sm:$0xf]
    %v102 = vld [vmem:[#allocation3 + $0x20] sm:$0xf]
    %v103 = vld [vmem:[#allocation3 + $0x24] sm:$0xf]
    %v104 = vld [vmem:[#allocation3 + $0x28] sm:$0xf]
    %v105 = vld [vmem:[#allocation3 + $0x2c] sm:$0xf]
    %v106 = vld [vmem:[#allocation3 + $0x30] sm:$0xf]
    %v107 = vld [vmem:[#allocation3 + $0x34] sm:$0xf]
    %v108 = vld [vmem:[#allocation3 + $0x38] sm:$0xf]
    %v109 = vld [vmem:[#allocation3 + $0x3c] sm:$0xf]
    %v110 = vld [vmem:[#allocation6] sm:$0xf]
    %v111 = vld [vmem:[#allocation6 + $0x4] sm:$0xf]
    %v112 = vld [vmem:[#allocation6 + $0x8] sm:$0xf]
    %v113 = vld [vmem:[#allocation6 + $0xc] sm:$0xf]
    %v114 = vld [vmem:[#allocation6 + $0x10] sm:$0xf]
    %v115 = vld [vmem:[#allocation6 + $0x14] sm:$0xf]
    %v116 = vld [vmem:[#allocation6 + $0x18] sm:$0xf]
    %v117 = vld [vmem:[#allocation6 + $0x1c] sm:$0xf]
    %v118 = vld [vmem:[#allocation6 + $0x20] sm:$0xf]
    %v119 = vld [vmem:[#allocation6 + $0x24] sm:$0xf]
    %v120 = vld [vmem:[#allocation6 + $0x28] sm:$0xf]
    %v121 = vld [vmem:[#allocation6 + $0x2c] sm:$0xf]
    %v122 = vld [vmem:[#allocation6 + $0x30] sm:$0xf]
    %v123 = vld [vmem:[#allocation6 + $0x34] sm:$0xf]
    %v124 = vld [vmem:[#allocation6 + $0x38] sm:$0xf]
    %v125 = vld [vmem:[#allocation6 + $0x3c] sm:$0xf]
    %v142 = vunpack.c.l.b16 %v94
    %v143 = vunpack.c.l.b16 %v95
    %v144 = vunpack.c.l.b16 %v96
    %v145 = vunpack.c.l.b16 %v97
    %v146 = vunpack.c.l.b16 %v98
    %v147 = vunpack.c.l.b16 %v99
    %v148 = vunpack.c.l.b16 %v100
    %v149 = vunpack.c.l.b16 %v101
    %v150 = vunpack.c.l.b16 %v102
    %v151 = vunpack.c.l.b16 %v103
    %v152 = vunpack.c.l.b16 %v104
    %v153 = vunpack.c.l.b16 %v105
    %v154 = vunpack.c.l.b16 %v106
    %v155 = vunpack.c.l.b16 %v107
    %v156 = vunpack.c.l.b16 %v108
    %v157 = vunpack.c.l.b16 %v109
    %v158 = vpack.c.b16 %v143, %v142
    %v159 = vpack.c.b16 %v145, %v144
    %v160 = vpack.c.b16 %v147, %v146
    %v161 = vpack.c.b16 %v149, %v148
    %v162 = vpack.c.b16 %v151, %v150
    %v163 = vpack.c.b16 %v153, %v152
    %v164 = vpack.c.b16 %v155, %v154
    %v165 = vpack.c.b16 %v157, %v156
    %v190 = vunpack.c.l.b16 %v110
    %v191 = vunpack.c.l.b16 %v111
    %v192 = vunpack.c.l.b16 %v112
    %v193 = vunpack.c.l.b16 %v113
    %v194 = vunpack.c.l.b16 %v114
    %v195 = vunpack.c.l.b16 %v115
    %v196 = vunpack.c.l.b16 %v116
    %v197 = vunpack.c.l.b16 %v117
    %v198 = vunpack.c.l.b16 %v118
    %v199 = vunpack.c.l.b16 %v119
    %v200 = vunpack.c.l.b16 %v120
    %v201 = vunpack.c.l.b16 %v121
    %v202 = vunpack.c.l.b16 %v122
    %v203 = vunpack.c.l.b16 %v123
    %v204 = vunpack.c.l.b16 %v124
    %v205 = vunpack.c.l.b16 %v125
    %v206 = vpack.c.b16 %v191, %v190
    %v207 = vpack.c.b16 %v193, %v192
    %v208 = vpack.c.b16 %v195, %v194
    %v209 = vpack.c.b16 %v197, %v196
    %v210 = vpack.c.b16 %v199, %v198
    %v211 = vpack.c.b16 %v201, %v200
    %v212 = vpack.c.b16 %v203, %v202
    %v213 = vpack.c.b16 %v205, %v204
    %222 = vmatprep.subr.bf16.mxu0 0
    %223 = vmatpush1.bf16.msra.mxu0 %v206
    %224 = vmatprep.subr.bf16.mxu0 0
    %225 = vmatpush1.bf16.msra.mxu0 %v207
    %226 = vmatprep.subr.bf16.mxu0 0
    %227 = vmatpush1.bf16.msra.mxu0 %v208
    %228 = vmatprep.subr.bf16.mxu0 0
    %229 = vmatpush1.bf16.msra.mxu0 %v209
    %230 = vmatprep.subr.bf16.mxu0 0
    %231 = vmatpush1.bf16.msra.mxu0 %v210
    %232 = vmatprep.subr.bf16.mxu0 0
    %233 = vmatpush1.bf16.msra.mxu0 %v211
    %234 = vmatprep.subr.bf16.mxu0 0
    %235 = vmatpush1.bf16.msra.mxu0 %v212
    %236 = vmatprep.subr.bf16.mxu0 0
    %237 = vmatpush1.bf16.msra.mxu0 %v213
    %238 = vmatprep.subr.bf16.mxu0 0
    %239 = vmatpush1.bf16.msra.mxu0 0
    %240 = vmatprep.subr.bf16.mxu0 0
    %241 = vmatpush1.bf16.msra.mxu0 0
    %242 = vmatprep.subr.bf16.mxu0 0
    %243 = vmatpush1.bf16.msra.mxu0 0
    %244 = vmatprep.subr.bf16.mxu0 0
    %245 = vmatpush1.bf16.msra.mxu0 0
    %246 = vmatprep.subr.bf16.mxu0 0
    %247 = vmatpush1.bf16.msra.mxu0 0
    %248 = vmatprep.subr.bf16.mxu0 0
    %249 = vmatpush1.bf16.msra.mxu0 0
    %250 = vmatprep.subr.bf16.mxu0 0
    %251 = vmatpush1.bf16.msra.mxu0 0
    %252 = vmatprep.subr.bf16.mxu0 0
    %253 = vmatpush1.bf16.msra.mxu0 0
    %254 = vmatprep.mubr.bf16.mxu0 0
    %255 = vmatmul.mubr.bf16.gmra.mrb[0].mxu0 %v158
    %v256 = vpop.f32.mrb[0].mxu0
    %v257 = vadd.f32 0.0, %v256
    %v258 = vpop.f32.mrb[0].mxu0
    %v259 = vpop.f32.mrb[0].mxu0
    %v260 = vadd.f32 0.0, %v259
    %v261 = vpop.f32.mrb[0].mxu0
    %262 = vmatprep.mubr.bf16.mxu0 0
    %263 = vmatmul.mubr.bf16.gmra.mrb[0].mxu0 %v159
    %v264 = vpop.f32.mrb[0].mxu0
    %v265 = vadd.f32 0.0, %v264
    %v266 = vpop.f32.mrb[0].mxu0
    %v267 = vpop.f32.mrb[0].mxu0
    %v268 = vadd.f32 0.0, %v267
    %v269 = vpop.f32.mrb[0].mxu0
    %270 = vmatprep.mubr.bf16.mxu0 0
    %271 = vmatmul.mubr.bf16.gmra.mrb[0].mxu0 %v160
    %v272 = vpop.f32.mrb[0].mxu0
    %v273 = vadd.f32 0.0, %v272
    %v274 = vpop.f32.mrb[0].mxu0
    %v275 = vpop.f32.mrb[0].mxu0
    %v276 = vadd.f32 0.0, %v275
    %v277 = vpop.f32.mrb[0].mxu0
    %278 = vmatprep.mubr.bf16.mxu0 0
    %279 = vmatmul.mubr.bf16.gmra.mrb[0].mxu0 %v161
    %v280 = vpop.f32.mrb[0].mxu0
    %v281 = vadd.f32 0.0, %v280
    %v282 = vpop.f32.mrb[0].mxu0
    %v283 = vpop.f32.mrb[0].mxu0
    %v284 = vadd.f32 0.0, %v283
    %v285 = vpop.f32.mrb[0].mxu0
    %286 = vmatprep.mubr.bf16.mxu0 0
    %287 = vmatmul.mubr.bf16.gmra.mrb[0].mxu0 %v162
    %v288 = vpop.f32.mrb[0].mxu0
    %v289 = vadd.f32 0.0, %v288
    %v290 = vpop.f32.mrb[0].mxu0
    %v291 = vpop.f32.mrb[0].mxu0
    %v292 = vadd.f32 0.0, %v291
    %v293 = vpop.f32.mrb[0].mxu0
    %294 = vmatprep.mubr.bf16.mxu0 0
    %295 = vmatmul.mubr.bf16.gmra.mrb[0].mxu0 %v163
    %v296 = vpop.f32.mrb[0].mxu0
    %v297 = vadd.f32 0.0, %v296
    %v298 = vpop.f32.mrb[0].mxu0
    %v299 = vpop.f32.mrb[0].mxu0
    %v300 = vadd.f32 0.0, %v299
    %v301 = vpop.f32.mrb[0].mxu0
    %302 = vmatprep.mubr.bf16.mxu0 0
    %303 = vmatmul.mubr.bf16.gmra.mrb[0].mxu0 %v164
    %v304 = vpop.f32.mrb[0].mxu0
    %v305 = vadd.f32 0.0, %v304
    %v306 = vpop.f32.mrb[0].mxu0
    %v307 = vpop.f32.mrb[0].mxu0
    %v308 = vadd.f32 0.0, %v307
    %v309 = vpop.f32.mrb[0].mxu0
    %310 = vmatprep.mubr.bf16.mxu0 0
    %311 = vmatmul.mubr.bf16.gmra.mrb[0].mxu0 %v165
    %v312 = vpop.f32.mrb[0].mxu0
    %v313 = vadd.f32 0.0, %v312
    %v314 = vpop.f32.mrb[0].mxu0
    %v315 = vpop.f32.mrb[0].mxu0
    %v316 = vadd.f32 0.0, %v315
    %v317 = vpop.f32.mrb[0].mxu0
    %318 = vdwg.mxu0
    %v319 = vld [vmem:[#allocation2] sm:$0xff]
    %v320 = vld [vmem:[#allocation2 + $0x8] sm:$0xff]
    %v321 = vld [vmem:[#allocation2 + $0x10] sm:$0xff]
    %v322 = vld [vmem:[#allocation2 + $0x18] sm:$0xff]
    %v323 = vld [vmem:[#allocation2 + $0x20] sm:$0xff]
    %v324 = vld [vmem:[#allocation2 + $0x28] sm:$0xff]
    %v325 = vld [vmem:[#allocation2 + $0x30] sm:$0xff]
    %v326 = vld [vmem:[#allocation2 + $0x38] sm:$0xff]
    %v327 = vld [vmem:[#allocation2 + $0x40] sm:$0xff]
    %v328 = vld [vmem:[#allocation2 + $0x48] sm:$0xff]
    %v329 = vld [vmem:[#allocation2 + $0x50] sm:$0xff]
    %v330 = vld [vmem:[#allocation2 + $0x58] sm:$0xff]
    %v331 = vld [vmem:[#allocation2 + $0x60] sm:$0xff]
    %v332 = vld [vmem:[#allocation2 + $0x68] sm:$0xff]
    %v333 = vld [vmem:[#allocation2 + $0x70] sm:$0xff]
    %v334 = vld [vmem:[#allocation2 + $0x78] sm:$0xff]
    %v335 = vld [vmem:[#allocation8] sm:$0xf]
    %v336 = vld [vmem:[#allocation8 + $0x4] sm:$0xf]
    %v337 = vld [vmem:[#allocation8 + $0x8] sm:$0xf]
    %v338 = vld [vmem:[#allocation8 + $0xc] sm:$0xf]
    %v339 = vld [vmem:[#allocation8 + $0x10] sm:$0xf]
    %v340 = vld [vmem:[#allocation8 + $0x14] sm:$0xf]
    %v341 = vld [vmem:[#allocation8 + $0x18] sm:$0xf]
    %v342 = vld [vmem:[#allocation8 + $0x1c] sm:$0xf]
    %v343 = vld [vmem:[#allocation8 + $0x20] sm:$0xf]
    %v344 = vld [vmem:[#allocation8 + $0x24] sm:$0xf]
    %v345 = vld [vmem:[#allocation8 + $0x28] sm:$0xf]
    %v346 = vld [vmem:[#allocation8 + $0x2c] sm:$0xf]
    %v347 = vld [vmem:[#allocation8 + $0x30] sm:$0xf]
    %v348 = vld [vmem:[#allocation8 + $0x34] sm:$0xf]
    %v349 = vld [vmem:[#allocation8 + $0x38] sm:$0xf]
    %v350 = vld [vmem:[#allocation8 + $0x3c] sm:$0xf]
    %v351 = vpack.c.bf16 %v260, %v257
    %v352 = vpack.c.bf16 %v268, %v265
    %v353 = vpack.c.bf16 %v276, %v273
    %v354 = vpack.c.bf16 %v284, %v281
    %v355 = vpack.c.bf16 %v292, %v289
    %v356 = vpack.c.bf16 %v300, %v297
    %v357 = vpack.c.bf16 %v308, %v305
    %v358 = vpack.c.bf16 %v316, %v313
    %v375 = vunpack.c.l.b16 %v335
    %v376 = vunpack.c.l.b16 %v336
    %v377 = vunpack.c.l.b16 %v337
    %v378 = vunpack.c.l.b16 %v338
    %v379 = vunpack.c.l.b16 %v339
    %v380 = vunpack.c.l.b16 %v340
    %v381 = vunpack.c.l.b16 %v341
    %v382 = vunpack.c.l.b16 %v342
    %v383 = vunpack.c.l.b16 %v343
    %v384 = vunpack.c.l.b16 %v344
    %v385 = vunpack.c.l.b16 %v345
    %v386 = vunpack.c.l.b16 %v346
    %v387 = vunpack.c.l.b16 %v347
    %v388 = vunpack.c.l.b16 %v348
    %v389 = vunpack.c.l.b16 %v349
    %v390 = vunpack.c.l.b16 %v350
    %v391 = vpack.c.b16 %v376, %v375
    %v392 = vpack.c.b16 %v378, %v377
    %v393 = vpack.c.b16 %v380, %v379
    %v394 = vpack.c.b16 %v382, %v381
    %v395 = vpack.c.b16 %v384, %v383
    %v396 = vpack.c.b16 %v386, %v385
    %v397 = vpack.c.b16 %v388, %v387
    %v398 = vpack.c.b16 %v390, %v389
    %407 = vmatprep.subr.bf16.mxu0 0
    %408 = vmatpush1.bf16.msra.mxu0 %v351
    %409 = vmatprep.subr.bf16.mxu0 0
    %410 = vmatpush1.bf16.msra.mxu0 %v352
    %411 = vmatprep.subr.bf16.mxu0 0
    %412 = vmatpush1.bf16.msra.mxu0 %v353
    %413 = vmatprep.subr.bf16.mxu0 0
    %414 = vmatpush1.bf16.msra.mxu0 %v354
    %415 = vmatprep.subr.bf16.mxu0 0
    %416 = vmatpush1.bf16.msra.mxu0 %v355
    %417 = vmatprep.subr.bf16.mxu0 0
    %418 = vmatpush1.bf16.msra.mxu0 %v356
    %419 = vmatprep.subr.bf16.mxu0 0
    %420 = vmatpush1.bf16.msra.mxu0 %v357
    %421 = vmatprep.subr.bf16.mxu0 0
    %422 = vmatpush1.bf16.msra.mxu0 %v358
    %423 = vmatprep.subr.bf16.mxu0 0
    %424 = vmatpush1.bf16.msra.mxu0 0
    %425 = vmatprep.subr.bf16.mxu0 0
    %426 = vmatpush1.bf16.msra.mxu0 0
    %427 = vmatprep.subr.bf16.mxu0 0
    %428 = vmatpush1.bf16.msra.mxu0 0
    %429 = vmatprep.subr.bf16.mxu0 0
    %430 = vmatpush1.bf16.msra.mxu0 0
    %431 = vmatprep.subr.bf16.mxu0 0
    %432 = vmatpush1.bf16.msra.mxu0 0
    %433 = vmatprep.subr.bf16.mxu0 0
    %434 = vmatpush1.bf16.msra.mxu0 0
    %435 = vmatprep.subr.bf16.mxu0 0
    %436 = vmatpush1.bf16.msra.mxu0 0
    %437 = vmatprep.subr.bf16.mxu0 0
    %438 = vmatpush1.bf16.msra.mxu0 0
    %439 = vmatprep.mubr.bf16.mxu0 0
    %440 = vmatmul.mubr.bf16.gmra.mrb[0].mxu0 %v391
    %v441 = vpop.f32.mrb[0].mxu0
    %v442 = vadd.f32 0.0, %v441
    %v443 = vpop.f32.mrb[0].mxu0
    %v444 = vpop.f32.mrb[0].mxu0
    %v445 = vadd.f32 0.0, %v444
    %v446 = vpop.f32.mrb[0].mxu0
    %447 = vmatprep.mubr.bf16.mxu0 0
    %448 = vmatmul.mubr.bf16.gmra.mrb[0].mxu0 %v392
    %v449 = vpop.f32.mrb[0].mxu0
    %v450 = vadd.f32 0.0, %v449
    %v451 = vpop.f32.mrb[0].mxu0
    %v452 = vpop.f32.mrb[0].mxu0
    %v453 = vadd.f32 0.0, %v452
    %v454 = vpop.f32.mrb[0].mxu0
    %455 = vmatprep.mubr.bf16.mxu0 0
    %456 = vmatmul.mubr.bf16.gmra.mrb[0].mxu0 %v393
    %v457 = vpop.f32.mrb[0].mxu0
    %v458 = vadd.f32 0.0, %v457
    %v459 = vpop.f32.mrb[0].mxu0
    %v460 = vpop.f32.mrb[0].mxu0
    %v461 = vadd.f32 0.0, %v460
    %v462 = vpop.f32.mrb[0].mxu0
    %463 = vmatprep.mubr.bf16.mxu0 0
    %464 = vmatmul.mubr.bf16.gmra.mrb[0].mxu0 %v394
    %v465 = vpop.f32.mrb[0].mxu0
    %v466 = vadd.f32 0.0, %v465
    %v467 = vpop.f32.mrb[0].mxu0
    %v468 = vpop.f32.mrb[0].mxu0
    %v469 = vadd.f32 0.0, %v468
    %v470 = vpop.f32.mrb[0].mxu0
    %471 = vmatprep.mubr.bf16.mxu0 0
    %472 = vmatmul.mubr.bf16.gmra.mrb[0].mxu0 %v395
    %v473 = vpop.f32.mrb[0].mxu0
    %v474 = vadd.f32 0.0, %v473
    %v475 = vpop.f32.mrb[0].mxu0
    %v476 = vpop.f32.mrb[0].mxu0
    %v477 = vadd.f32 0.0, %v476
    %v478 = vpop.f32.mrb[0].mxu0
    %479 = vmatprep.mubr.bf16.mxu0 0
    %480 = vmatmul.mubr.bf16.gmra.mrb[0].mxu0 %v396
    %v481 = vpop.f32.mrb[0].mxu0
    %v482 = vadd.f32 0.0, %v481
    %v483 = vpop.f32.mrb[0].mxu0
    %v484 = vpop.f32.mrb[0].mxu0
    %v485 = vadd.f32 0.0, %v484
    %v486 = vpop.f32.mrb[0].mxu0
    %487 = vmatprep.mubr.bf16.mxu0 0
    %488 = vmatmul.mubr.bf16.gmra.mrb[0].mxu0 %v397
    %v489 = vpop.f32.mrb[0].mxu0
    %v490 = vadd.f32 0.0, %v489
    %v491 = vpop.f32.mrb[0].mxu0
    %v492 = vpop.f32.mrb[0].mxu0
    %v493 = vadd.f32 0.0, %v492
    %v494 = vpop.f32.mrb[0].mxu0
    %495 = vmatprep.mubr.bf16.mxu0 0
    %496 = vmatmul.mubr.bf16.gmra.mrb[0].mxu0 %v398
    %v497 = vpop.f32.mrb[0].mxu0
    %v498 = vadd.f32 0.0, %v497
    %v499 = vpop.f32.mrb[0].mxu0
    %v500 = vpop.f32.mrb[0].mxu0
    %v501 = vadd.f32 0.0, %v500
    %v502 = vpop.f32.mrb[0].mxu0
    %503 = vdwg.mxu0
    %v504 = vadd.f32 %v319, %v442
    %v505 = vadd.f32 %v320, %v445
    %v506 = vadd.f32 %v321, %v450
    %v507 = vadd.f32 %v322, %v453
    %v508 = vadd.f32 %v323, %v458
    %v509 = vadd.f32 %v324, %v461
    %v510 = vadd.f32 %v325, %v466
    %v511 = vadd.f32 %v326, %v469
    %v512 = vadd.f32 %v327, %v474
    %v513 = vadd.f32 %v328, %v477
    %v514 = vadd.f32 %v329, %v482
    %v515 = vadd.f32 %v330, %v485
    %v516 = vadd.f32 %v331, %v490
    %v517 = vadd.f32 %v332, %v493
    %v518 = vadd.f32 %v333, %v498
    %v519 = vadd.f32 %v334, %v501
    %520 = vst [vmem:[#allocation2] sm:$0xff] %v504
    %521 = vst [vmem:[#allocation2 + $0x8] sm:$0xff] %v505
    %522 = vst [vmem:[#allocation2 + $0x10] sm:$0xff] %v506
    %523 = vst [vmem:[#allocation2 + $0x18] sm:$0xff] %v507
    %524 = vst [vmem:[#allocation2 + $0x20] sm:$0xff] %v508
    %525 = vst [vmem:[#allocation2 + $0x28] sm:$0xff] %v509
    %526 = vst [vmem:[#allocation2 + $0x30] sm:$0xff] %v510
    %527 = vst [vmem:[#allocation2 + $0x38] sm:$0xff] %v511
    %528 = vst [vmem:[#allocation2 + $0x40] sm:$0xff] %v512
    %529 = vst [vmem:[#allocation2 + $0x48] sm:$0xff] %v513
    %530 = vst [vmem:[#allocation2 + $0x50] sm:$0xff] %v514
    %531 = vst [vmem:[#allocation2 + $0x58] sm:$0xff] %v515
    %532 = vst [vmem:[#allocation2 + $0x60] sm:$0xff] %v516
    %533 = vst [vmem:[#allocation2 + $0x68] sm:$0xff] %v517
    %534 = vst [vmem:[#allocation2 + $0x70] sm:$0xff] %v518
    %535 = vst [vmem:[#allocation2 + $0x78] sm:$0xff] %v519
    // Predicated region
    $region38: #{tpu_custom_call.1} parent=1 // pred_check
      %p536 = pneg %p74
    $region39: #{tpu_custom_call.1} parent=1 // pred_check_branch
      %538 = sbr.rel (%p536) target = $region41
    $region40: #{tpu_custom_call.1} parent=1 // pred_region
      %v539 = vld [vmem:[#allocation2] sm:$0xff]
      %v540 = vld [vmem:[#allocation2 + $0x8] sm:$0xff]
      %v541 = vld [vmem:[#allocation2 + $0x10] sm:$0xff]
      %v542 = vld [vmem:[#allocation2 + $0x18] sm:$0xff]
      %v543 = vld [vmem:[#allocation2 + $0x20] sm:$0xff]
      %v544 = vld [vmem:[#allocation2 + $0x28] sm:$0xff]
      %v545 = vld [vmem:[#allocation2 + $0x30] sm:$0xff]
      %v546 = vld [vmem:[#allocation2 + $0x38] sm:$0xff]
      %v547 = vld [vmem:[#allocation2 + $0x40] sm:$0xff]
      %v548 = vld [vmem:[#allocation2 + $0x48] sm:$0xff]
      %v549 = vld [vmem:[#allocation2 + $0x50] sm:$0xff]
      %v550 = vld [vmem:[#allocation2 + $0x58] sm:$0xff]
      %v551 = vld [vmem:[#allocation2 + $0x60] sm:$0xff]
      %v552 = vld [vmem:[#allocation2 + $0x68] sm:$0xff]
      %v553 = vld [vmem:[#allocation2 + $0x70] sm:$0xff]
      %v554 = vld [vmem:[#allocation2 + $0x78] sm:$0xff]
      %v555 = vld [vmem:[#allocation9] sm:$0xff]
      %v556 = vld [vmem:[#allocation9 + $0x8] sm:$0xff]
      %v557 = vld [vmem:[#allocation9 + $0x10] sm:$0xff]
      %v558 = vld [vmem:[#allocation9 + $0x18] sm:$0xff]
      %v559 = vld [vmem:[#allocation9 + $0x20] sm:$0xff]
      %v560 = vld [vmem:[#allocation9 + $0x28] sm:$0xff]
      %v561 = vld [vmem:[#allocation9 + $0x30] sm:$0xff]
      %v562 = vld [vmem:[#allocation9 + $0x38] sm:$0xff]
      %v563 = vld [vmem:[#allocation9 + $0x40] sm:$0xff]
      %v564 = vld [vmem:[#allocation9 + $0x48] sm:$0xff]
      %v565 = vld [vmem:[#allocation9 + $0x50] sm:$0xff]
      %v566 = vld [vmem:[#allocation9 + $0x58] sm:$0xff]
      %v567 = vld [vmem:[#allocation9 + $0x60] sm:$0xff]
      %v568 = vld [vmem:[#allocation9 + $0x68] sm:$0xff]
      %v569 = vld [vmem:[#allocation9 + $0x70] sm:$0xff]
      %v570 = vld [vmem:[#allocation9 + $0x78] sm:$0xff]
      %572 = vset.pattern.permute.xlu0 0
      %573 = vperm.xlu0 %572, %v555
      %v574 = vpop.permute.xlu0 %573
      %577 = vset.pattern.permute.xlu0 0
      %578 = vperm.xlu0 %577, %v556
      %v579 = vpop.permute.xlu0 %578
      %582 = vset.pattern.permute.xlu0 0
      %583 = vperm.xlu0 %582, %v557
      %v584 = vpop.permute.xlu0 %583
      %587 = vset.pattern.permute.xlu0 0
      %588 = vperm.xlu0 %587, %v558
      %v589 = vpop.permute.xlu0 %588
      %592 = vset.pattern.permute.xlu0 0
      %593 = vperm.xlu0 %592, %v559
      %v594 = vpop.permute.xlu0 %593
      %597 = vset.pattern.permute.xlu0 0
      %598 = vperm.xlu0 %597, %v560
      %v599 = vpop.permute.xlu0 %598
      %602 = vset.pattern.permute.xlu0 0
      %603 = vperm.xlu0 %602, %v561
      %v604 = vpop.permute.xlu0 %603
      %607 = vset.pattern.permute.xlu0 0
      %608 = vperm.xlu0 %607, %v562
      %v609 = vpop.permute.xlu0 %608
      %612 = vset.pattern.permute.xlu0 0
      %613 = vperm.xlu0 %612, %v563
      %v614 = vpop.permute.xlu0 %613
      %617 = vset.pattern.permute.xlu0 0
      %618 = vperm.xlu0 %617, %v564
      %v619 = vpop.permute.xlu0 %618
      %622 = vset.pattern.permute.xlu0 0
      %623 = vperm.xlu0 %622, %v565
      %v624 = vpop.permute.xlu0 %623
      %627 = vset.pattern.permute.xlu0 0
      %628 = vperm.xlu0 %627, %v566
      %v629 = vpop.permute.xlu0 %628
      %632 = vset.pattern.permute.xlu0 0
      %633 = vperm.xlu0 %632, %v567
      %v634 = vpop.permute.xlu0 %633
      %637 = vset.pattern.permute.xlu0 0
      %638 = vperm.xlu0 %637, %v568
      %v639 = vpop.permute.xlu0 %638
      %642 = vset.pattern.permute.xlu0 0
      %643 = vperm.xlu0 %642, %v569
      %v644 = vpop.permute.xlu0 %643
      %647 = vset.pattern.permute.xlu0 0
      %648 = vperm.xlu0 %647, %v570
      %v649 = vpop.permute.xlu0 %648
      %v651 = vadd.f32 %v539, %v574
      %v652 = vadd.f32 %v540, %v579
      %v653 = vadd.f32 %v541, %v584
      %v654 = vadd.f32 %v542, %v589
      %v655 = vadd.f32 %v543, %v594
      %v656 = vadd.f32 %v544, %v599
      %v657 = vadd.f32 %v545, %v604
      %v658 = vadd.f32 %v546, %v609
      %v659 = vadd.f32 %v547, %v614
      %v660 = vadd.f32 %v548, %v619
      %v661 = vadd.f32 %v549, %v624
      %v662 = vadd.f32 %v550, %v629
      %v663 = vadd.f32 %v551, %v634
      %v664 = vadd.f32 %v552, %v639
      %v665 = vadd.f32 %v553, %v644
      %v666 = vadd.f32 %v554, %v649
      %v667 = vmax.f32 %v651, 0.0
      %v668 = vmax.f32 %v652, 0.0
      %v669 = vmax.f32 %v653, 0.0
      %v670 = vmax.f32 %v654, 0.0
      %v671 = vmax.f32 %v655, 0.0
      %v672 = vmax.f32 %v656, 0.0
      %v673 = vmax.f32 %v657, 0.0
      %v674 = vmax.f32 %v658, 0.0
      %v675 = vmax.f32 %v659, 0.0
      %v676 = vmax.f32 %v660, 0.0
      %v677 = vmax.f32 %v661, 0.0
      %v678 = vmax.f32 %v662, 0.0
      %v679 = vmax.f32 %v663, 0.0
      %v680 = vmax.f32 %v664, 0.0
      %v681 = vmax.f32 %v665, 0.0
      %v682 = vmax.f32 %v666, 0.0
      %683 = vst [vmem:[#allocation11] sm:$0xff] %v667
      %684 = vst [vmem:[#allocation11 + $0x8] sm:$0xff] %v668
      %685 = vst [vmem:[#allocation11 + $0x10] sm:$0xff] %v669
      %686 = vst [vmem:[#allocation11 + $0x18] sm:$0xff] %v670
      %687 = vst [vmem:[#allocation11 + $0x20] sm:$0xff] %v671
      %688 = vst [vmem:[#allocation11 + $0x28] sm:$0xff] %v672
      %689 = vst [vmem:[#allocation11 + $0x30] sm:$0xff] %v673
      %690 = vst [vmem:[#allocation11 + $0x38] sm:$0xff] %v674
      %691 = vst [vmem:[#allocation11 + $0x40] sm:$0xff] %v675
      %692 = vst [vmem:[#allocation11 + $0x48] sm:$0xff] %v676
      %693 = vst [vmem:[#allocation11 + $0x50] sm:$0xff] %v677
      %694 = vst [vmem:[#allocation11 + $0x58] sm:$0xff] %v678
      %695 = vst [vmem:[#allocation11 + $0x60] sm:$0xff] %v679
      %696 = vst [vmem:[#allocation11 + $0x68] sm:$0xff] %v680
      %697 = vst [vmem:[#allocation11 + $0x70] sm:$0xff] %v681
      %698 = vst [vmem:[#allocation11 + $0x78] sm:$0xff] %v682
    $region41: #{tpu_custom_call.1} parent=1 // pred_fallthru
      _
    // Predicated region
    $region42: #{tpu_custom_call.1} parent=1 // pred_check
      _
    $region43: #{tpu_custom_call.1} parent=1 // pred_check_branch
      %700 = sbr.rel (0) target = $region45
    $region44: #{tpu_custom_call.1} parent=1 // pred_region
      %s702 = ssub.s32 2048, 2048
      %703 = vsyncadd [#allocation5], %s702
      %s704 = sshll.u32 [#allocation11], 4
      %s705 = int_to_ptr.vmem [resolvable:$true] %s704
      %710 = dma.vmem_to_hbm [thread:$0]  %s705, 2048, %s4, [#allocation5], 128, 128, 8
    $region45: #{tpu_custom_call.1} parent=1 // pred_fallthru
      _
    // Predicated region
    $region46: #{tpu_custom_call.1} parent=1 // pred_check
      _
    $region47: #{tpu_custom_call.1} parent=1 // pred_check_branch
      %712 = sbr.rel (0) target = $region49
    $region48: #{tpu_custom_call.1} parent=1 // pred_region
      %713 = dma.done [#allocation5], 2048
    $region49: #{tpu_custom_call.1} parent=1 // pred_fallthru
      _
    %714 = vsyncpa [#allocation4], 1
    %715 = vsyncpa [#allocation7], 1
    %716 = vsyncpa [#allocation10], 1
    %717 = vsyncpa [#allocation5], 1

</llo_original>
